<compile_context>
chip_gen: v7x
topology: tpu7x:2x2x1
jax: 0.10.0
libtpu: 0.0.40
codegen_flags: <defaults>
</compile_context>

<pallas_src>
import functools

import jax
import jax.numpy as jnp
from jax.experimental import pallas as pl
from jax.experimental.pallas import tpu as pltpu

LANE = 128      # feature (lane) dims padded to this -> lane-dense stores / MXU shapes
SUBLANE = 8     # f32 sublane quantum -> node dim only needs this


def _round_up(x, m):
    return (x + m - 1) // m * m


# ----------------------------- Pallas kernel --------------------------------
def fused_gcn_kernel(num_layers, a_ref, x_ref, w_ref, b_ref, o_ref):
    """All GCNConv layers in one kernel.

    a_ref: (NP, NP) bf16   padded normalized adjacency (VMEM-resident for all layers)
    x_ref: (NP, FP) f32    padded node features
    w_ref: (L, FP, FP) f32 zero-padded, stacked layer weights
    b_ref: (L, 1, FP) f32  zero-padded, stacked layer biases
    o_ref: (NP, FP) f32    padded output (full lane-dense store)
    """
    a = a_ref[...]                       # bf16, loaded once, reused by every layer
    h = x_ref[...]                       # f32
    # Static Python loop -> fully unrolled; L = 5, gives the LLO scheduler full view.
    for l in range(num_layers):
        xw = jnp.dot(h, w_ref[l], preferred_element_type=jnp.float32)
        agg = jnp.dot(a, xw.astype(jnp.bfloat16),      # bf16 MXU path, f32 accumulate
                      preferred_element_type=jnp.float32)
        out = agg + b_ref[l]                           # f32 epilogue (v5e-safe)
        if l < num_layers - 1:
            out = jnp.maximum(out, 0.0)
        h = out
    o_ref[...] = h


def gcn_forward_fused(params, x, a_norm_bf16):
    """relu?(A @ (h @ W_l) + b_l) for l = 1..5, all inside one pallas_call.

    a_norm_bf16: (NP, NP) bf16, already padded & normalized (see build_norm_adj).
    """
    n, f_in = x.shape
    np_ = a_norm_bf16.shape[0]
    num_layers = len(params)

    # Feature dims padded to a lane multiple (lane-dense matmuls and output store).
    f_max = max([f_in] + [d for p in params for d in p["w"].shape])
    fp = _round_up(f_max, LANE)

    x_pad = jnp.zeros((np_, fp), jnp.float32).at[:n, :f_in].set(x)

    # All hidden widths <= 128 -> per-layer padding == uniform (FP, FP); stack them.
    w_stack = jnp.zeros((num_layers, fp, fp), jnp.float32)
    b_stack = jnp.zeros((num_layers, 1, fp), jnp.float32)
    for i, p in enumerate(params):
        fi, fo = p["w"].shape
        w_stack = w_stack.at[i, :fi, :fo].set(p["w"])
        b_stack = b_stack.at[i, 0, :fo].set(p["b"])

    out_pad = pl.pallas_call(
        functools.partial(fused_gcn_kernel, num_layers),
        out_shape=jax.ShapeDtypeStruct((np_, fp), jnp.float32),
        in_specs=[
            pl.BlockSpec((np_, np_), lambda: (0, 0)),               # A_norm (bf16)
            pl.BlockSpec((np_, fp), lambda: (0, 0)),                # x
            pl.BlockSpec((num_layers, fp, fp), lambda: (0, 0, 0)),  # stacked W
            pl.BlockSpec((num_layers, 1, fp), lambda: (0, 0, 0)),   # stacked bias
        ],
        out_specs=pl.BlockSpec((np_, fp), lambda: (0, 0)),
        # 32 MiB fits every generation (v7x physical VMEM is 64 MiB); working set <1 MiB.
        compiler_params=pltpu.CompilerParams(vmem_limit_bytes=32 << 20),
    )(a_norm_bf16, x_pad, w_stack, b_stack)

    f_out_last = params[-1]["w"].shape[1]
    # NOTE: padded node rows (if NP > N) accumulate relu(bias) but never contaminate
    # real rows (A's padded columns are zero) and are sliced away here.
    return out_pad[:n, :f_out_last]


# ----------------------------- JAX glue --------------------------------------
def build_norm_adj(edge_index, edge_weight, num_nodes, num_nodes_padded, improved):
    """Dense GCN normalization D^{-1/2} (A + fill*I) D^{-1/2}, built directly into the
    padded (NP, NP) buffer (no separate pad-copy over A) and returned as bf16.

    edge_index: (2, E) int32, [source_row; target_col] (PyG convention).
    A_dense[i, j] = weight of edge j -> i, so aggregation is a row matvec.
    """
    fill = 2.0 if improved else 1.0
    row, col = edge_index[0], edge_index[1]
    a = jnp.zeros((num_nodes_padded, num_nodes_padded), jnp.float32)
    a = a.at[col, row].add(edge_weight)
    real = jnp.arange(num_nodes_padded) < num_nodes
    a = a + jnp.diag(jnp.where(real, fill, 0.0))          # self-loops on real nodes only
    deg = a.sum(axis=1)
    dinv = jnp.where(deg > 0, 1.0 / jnp.sqrt(deg), 0.0)   # padded rows -> 0
    return (dinv[:, None] * a * dinv[None, :]).astype(jnp.bfloat16)


def glorot(key, shape):
    limit = jnp.sqrt(6.0 / (shape[0] + shape[1]))
    return jax.random.uniform(key, shape, jnp.float32, -limit, limit)


def init_gcn_params(key, num_node_features):
    # Only the layers actually used in forward(): conv1..conv4, conv4_1.
    dims = [(num_node_features, 100), (100, 70), (70, 40), (40, 20), (20, 1)]
    keys = jax.random.split(key, len(dims))
    params = []
    for k, (fi, fo) in zip(keys, dims):
        params.append({"w": glorot(k, (fi, fo)), "b": jnp.zeros((fo,), jnp.float32)})
    return params


# ----------------------------- Example run ----------------------------------
if __name__ == "__main__":
    key = jax.random.PRNGKey(0)
    k_x, k_e, k_w, k_p = jax.random.split(key, 4)

    N = 16                    # nodes
    F_IN = 8                  # data.num_node_features
    E = 32                    # directed edges
    NP = _round_up(N, SUBLANE)  # node dim padded to f32 sublane only (16, not 128)

    x = jax.random.normal(k_x, (N, F_IN), jnp.float32)
    edge_index = jax.random.randint(k_e, (2, E), 0, N, jnp.int32)
    raw_edge_weight = jax.random.uniform(k_w, (E,), jnp.float32, 0.5, 2.0)
    edge_weight = 1.0 / raw_edge_weight ** 1   # matches the script's preprocessing

    a_norm_bf16 = build_norm_adj(edge_index, edge_weight, N, NP, improved=True)
    params = init_gcn_params(k_p, F_IN)

    # TODO(synk): nn.Dropout(0.1) is stochastic; treated as identity (eval mode).
    out = gcn_forward_fused(params, x, a_norm_bf16)
    out = jax.block_until_ready(out)

    # Sanity check: pure-JAX reference mirroring the same bf16 quantization of A and
    # of the activation fed into the aggregation matmul (f32 accumulation everywhere).
    a_q = a_norm_bf16[:N, :N].astype(jnp.float32)
    h_ref = x
    for i, layer in enumerate(params):
        xw = jnp.dot(h_ref, layer["w"], precision=jax.lax.Precision.HIGHEST)
        h_ref = jnp.dot(a_q, xw.astype(jnp.bfloat16).astype(jnp.float32),
                        precision=jax.lax.Precision.HIGHEST) + layer["b"]
        if i < len(params) - 1:
            h_ref = jnp.maximum(h_ref, 0.0)

    assert out.shape == (N, 1)
    assert jnp.allclose(out, h_ref, atol=1e-3, rtol=1e-3), \
        float(jnp.max(jnp.abs(out - h_ref)))

    print("KERNEL_OK")
</pallas_src>

<mosaic_0001>
module attributes {stable_mosaic.version = 11 : i64} {
  func.func @fused_gcn_kernel(%arg0: memref<16x16xbf16, #tpu.memory_space<vmem>>, %arg1: memref<16x128xf32, #tpu.memory_space<vmem>>, %arg2: memref<5x128x128xf32, #tpu.memory_space<vmem>>, %arg3: memref<5x1x128xf32, #tpu.memory_space<vmem>>, %arg4: memref<16x128xf32, #tpu.memory_space<vmem>>) attributes {dimension_semantics = [], scalar_prefetch = 0 : i64, scratch_operands = 0 : i64, tpu.core_type = #tpu.core_type<tc>} {
    %c0 = arith.constant 0 : index
    %c0_0 = arith.constant 0 : index
    %0 = vector.load %arg0[%c0, %c0_0] : memref<16x16xbf16, #tpu.memory_space<vmem>>, vector<16x16xbf16>
    %c0_1 = arith.constant 0 : index
    %c0_2 = arith.constant 0 : index
    %1 = vector.load %arg1[%c0_1, %c0_2] : memref<16x128xf32, #tpu.memory_space<vmem>>, vector<16x128xf32>
    %c0_3 = arith.constant 0 : index
    %c0_4 = arith.constant 0 : index
    %c0_5 = arith.constant 0 : index
    %2 = vector.load %arg2[%c0_3, %c0_4, %c0_5] : memref<5x128x128xf32, #tpu.memory_space<vmem>>, vector<1x128x128xf32>
    %3 = vector.shape_cast %2 : vector<1x128x128xf32> to vector<128x128xf32>
    %cst = arith.constant dense<0.000000e+00> : vector<16x128xf32>
    %4 = tpu.matmul %1, %3, %cst {dimension_numbers = #tpu.dot_dimension_numbers<[1], [0], [0], [1], [0, 0, 1, 1], [], []>} : vector<16x128xf32>, vector<128x128xf32>, vector<16x128xf32> -> vector<16x128xf32>
    %5 = arith.truncf %4 : vector<16x128xf32> to vector<16x128xbf16>
    %cst_6 = arith.constant dense<0.000000e+00> : vector<16x128xf32>
    %6 = tpu.matmul %0, %5, %cst_6 {dimension_numbers = #tpu.dot_dimension_numbers<[1], [0], [0], [1], [0, 0, 1, 1], [], []>} : vector<16x16xbf16>, vector<16x128xbf16>, vector<16x128xf32> -> vector<16x128xf32>
    %c0_7 = arith.constant 0 : index
    %c0_8 = arith.constant 0 : index
    %c0_9 = arith.constant 0 : index
    %7 = vector.load %arg3[%c0_7, %c0_8, %c0_9] : memref<5x1x128xf32, #tpu.memory_space<vmem>>, vector<1x1x128xf32>
    %8 = vector.shape_cast %7 : vector<1x1x128xf32> to vector<1x128xf32>
    %9 = vector.broadcast %8 : vector<1x128xf32> to vector<16x128xf32>
    %10 = arith.addf %6, %9 : vector<16x128xf32>
    %cst_10 = arith.constant 0.000000e+00 : f32
    %11 = vector.broadcast %cst_10 : f32 to vector<16x128xf32>
    %12 = arith.maximumf %10, %11 : vector<16x128xf32>
    %c1 = arith.constant 1 : index
    %c0_11 = arith.constant 0 : index
    %c0_12 = arith.constant 0 : index
    %13 = vector.load %arg2[%c1, %c0_11, %c0_12] : memref<5x128x128xf32, #tpu.memory_space<vmem>>, vector<1x128x128xf32>
    %14 = vector.shape_cast %13 : vector<1x128x128xf32> to vector<128x128xf32>
    %cst_13 = arith.constant dense<0.000000e+00> : vector<16x128xf32>
    %15 = tpu.matmul %12, %14, %cst_13 {dimension_numbers = #tpu.dot_dimension_numbers<[1], [0], [0], [1], [0, 0, 1, 1], [], []>} : vector<16x128xf32>, vector<128x128xf32>, vector<16x128xf32> -> vector<16x128xf32>
    %16 = arith.truncf %15 : vector<16x128xf32> to vector<16x128xbf16>
    %cst_14 = arith.constant dense<0.000000e+00> : vector<16x128xf32>
    %17 = tpu.matmul %0, %16, %cst_14 {dimension_numbers = #tpu.dot_dimension_numbers<[1], [0], [0], [1], [0, 0, 1, 1], [], []>} : vector<16x16xbf16>, vector<16x128xbf16>, vector<16x128xf32> -> vector<16x128xf32>
    %c1_15 = arith.constant 1 : index
    %c0_16 = arith.constant 0 : index
    %c0_17 = arith.constant 0 : index
    %18 = vector.load %arg3[%c1_15, %c0_16, %c0_17] : memref<5x1x128xf32, #tpu.memory_space<vmem>>, vector<1x1x128xf32>
    %19 = vector.shape_cast %18 : vector<1x1x128xf32> to vector<1x128xf32>
    %20 = vector.broadcast %19 : vector<1x128xf32> to vector<16x128xf32>
    %21 = arith.addf %17, %20 : vector<16x128xf32>
    %cst_18 = arith.constant 0.000000e+00 : f32
    %22 = vector.broadcast %cst_18 : f32 to vector<16x128xf32>
    %23 = arith.maximumf %21, %22 : vector<16x128xf32>
    %c2 = arith.constant 2 : index
    %c0_19 = arith.constant 0 : index
    %c0_20 = arith.constant 0 : index
    %24 = vector.load %arg2[%c2, %c0_19, %c0_20] : memref<5x128x128xf32, #tpu.memory_space<vmem>>, vector<1x128x128xf32>
    %25 = vector.shape_cast %24 : vector<1x128x128xf32> to vector<128x128xf32>
    %cst_21 = arith.constant dense<0.000000e+00> : vector<16x128xf32>
    %26 = tpu.matmul %23, %25, %cst_21 {dimension_numbers = #tpu.dot_dimension_numbers<[1], [0], [0], [1], [0, 0, 1, 1], [], []>} : vector<16x128xf32>, vector<128x128xf32>, vector<16x128xf32> -> vector<16x128xf32>
    %27 = arith.truncf %26 : vector<16x128xf32> to vector<16x128xbf16>
    %cst_22 = arith.constant dense<0.000000e+00> : vector<16x128xf32>
    %28 = tpu.matmul %0, %27, %cst_22 {dimension_numbers = #tpu.dot_dimension_numbers<[1], [0], [0], [1], [0, 0, 1, 1], [], []>} : vector<16x16xbf16>, vector<16x128xbf16>, vector<16x128xf32> -> vector<16x128xf32>
    %c2_23 = arith.constant 2 : index
    %c0_24 = arith.constant 0 : index
    %c0_25 = arith.constant 0 : index
    %29 = vector.load %arg3[%c2_23, %c0_24, %c0_25] : memref<5x1x128xf32, #tpu.memory_space<vmem>>, vector<1x1x128xf32>
    %30 = vector.shape_cast %29 : vector<1x1x128xf32> to vector<1x128xf32>
    %31 = vector.broadcast %30 : vector<1x128xf32> to vector<16x128xf32>
    %32 = arith.addf %28, %31 : vector<16x128xf32>
    %cst_26 = arith.constant 0.000000e+00 : f32
    %33 = vector.broadcast %cst_26 : f32 to vector<16x128xf32>
    %34 = arith.maximumf %32, %33 : vector<16x128xf32>
    %c3 = arith.constant 3 : index
    %c0_27 = arith.constant 0 : index
    %c0_28 = arith.constant 0 : index
    %35 = vector.load %arg2[%c3, %c0_27, %c0_28] : memref<5x128x128xf32, #tpu.memory_space<vmem>>, vector<1x128x128xf32>
    %36 = vector.shape_cast %35 : vector<1x128x128xf32> to vector<128x128xf32>
    %cst_29 = arith.constant dense<0.000000e+00> : vector<16x128xf32>
    %37 = tpu.matmul %34, %36, %cst_29 {dimension_numbers = #tpu.dot_dimension_numbers<[1], [0], [0], [1], [0, 0, 1, 1], [], []>} : vector<16x128xf32>, vector<128x128xf32>, vector<16x128xf32> -> vector<16x128xf32>
    %38 = arith.truncf %37 : vector<16x128xf32> to vector<16x128xbf16>
    %cst_30 = arith.constant dense<0.000000e+00> : vector<16x128xf32>
    %39 = tpu.matmul %0, %38, %cst_30 {dimension_numbers = #tpu.dot_dimension_numbers<[1], [0], [0], [1], [0, 0, 1, 1], [], []>} : vector<16x16xbf16>, vector<16x128xbf16>, vector<16x128xf32> -> vector<16x128xf32>
    %c3_31 = arith.constant 3 : index
    %c0_32 = arith.constant 0 : index
    %c0_33 = arith.constant 0 : index
    %40 = vector.load %arg3[%c3_31, %c0_32, %c0_33] : memref<5x1x128xf32, #tpu.memory_space<vmem>>, vector<1x1x128xf32>
    %41 = vector.shape_cast %40 : vector<1x1x128xf32> to vector<1x128xf32>
    %42 = vector.broadcast %41 : vector<1x128xf32> to vector<16x128xf32>
    %43 = arith.addf %39, %42 : vector<16x128xf32>
    %cst_34 = arith.constant 0.000000e+00 : f32
    %44 = vector.broadcast %cst_34 : f32 to vector<16x128xf32>
    %45 = arith.maximumf %43, %44 : vector<16x128xf32>
    %c4 = arith.constant 4 : index
    %c0_35 = arith.constant 0 : index
    %c0_36 = arith.constant 0 : index
    %46 = vector.load %arg2[%c4, %c0_35, %c0_36] : memref<5x128x128xf32, #tpu.memory_space<vmem>>, vector<1x128x128xf32>
    %47 = vector.shape_cast %46 : vector<1x128x128xf32> to vector<128x128xf32>
    %cst_37 = arith.constant dense<0.000000e+00> : vector<16x128xf32>
    %48 = tpu.matmul %45, %47, %cst_37 {dimension_numbers = #tpu.dot_dimension_numbers<[1], [0], [0], [1], [0, 0, 1, 1], [], []>} : vector<16x128xf32>, vector<128x128xf32>, vector<16x128xf32> -> vector<16x128xf32>
    %49 = arith.truncf %48 : vector<16x128xf32> to vector<16x128xbf16>
    %cst_38 = arith.constant dense<0.000000e+00> : vector<16x128xf32>
    %50 = tpu.matmul %0, %49, %cst_38 {dimension_numbers = #tpu.dot_dimension_numbers<[1], [0], [0], [1], [0, 0, 1, 1], [], []>} : vector<16x16xbf16>, vector<16x128xbf16>, vector<16x128xf32> -> vector<16x128xf32>
    %c4_39 = arith.constant 4 : index
    %c0_40 = arith.constant 0 : index
    %c0_41 = arith.constant 0 : index
    %51 = vector.load %arg3[%c4_39, %c0_40, %c0_41] : memref<5x1x128xf32, #tpu.memory_space<vmem>>, vector<1x1x128xf32>
    %52 = vector.shape_cast %51 : vector<1x1x128xf32> to vector<1x128xf32>
    %53 = vector.broadcast %52 : vector<1x128xf32> to vector<16x128xf32>
    %54 = arith.addf %50, %53 : vector<16x128xf32>
    %c0_42 = arith.constant 0 : index
    %c0_43 = arith.constant 0 : index
    %55 = vector.load %arg4[%c0_42, %c0_43] : memref<16x128xf32, #tpu.memory_space<vmem>>, vector<16x128xf32>
    tpu.vector_store %arg4[%c0_42, %c0_43], %54 {strides = array<i32>} : memref<16x128xf32, #tpu.memory_space<vmem>>, vector<16x128xf32>,
    return
  }
}

</mosaic_0001>

<llo_original>
// kernel: tpu_custom_call.1
$region0: #{tpu_custom_call.1}
  #allocation0 [shape = 'u32[]', space=smem, size = 0x4, offset = 0x4, fixed_abs, tag = 'smem constant byte address 0x4 - core index']
  #allocation1 [shape = 'u32[144,128]{1,0:T(1,128)}', space=vmem, size = 0x12000, scoped, tag = 'internal scratch']
  %s0 = inlined_call_operand.hbm [shape: bf16[16,16], index: 0, kind: input, shape index: {}]
  %s1 = inlined_call_operand.hbm [shape: f32[16,128], index: 1, kind: input, shape index: {}]
  %s2 = inlined_call_operand.hbm [shape: f32[5,128,128], index: 2, kind: input, shape index: {}]
  %s3 = inlined_call_operand.vmem [shape: f32[5,1,128], index: 3, kind: input, shape index: {}]
  %s4 = inlined_call_operand.hbm [shape: f32[16,128], index: 4, kind: output, shape index: {}]
  %s5 = sld [smem:[#allocation0]]
  $region38: #{tpu_custom_call.1} parent=0
    _
  %s7 = ssub.s32 1, %s5
  %s8 = scalar_select 0, %s7, %s5
  $region1: #{tpu_custom_call.1} parent=0
    #allocation2 [shape = 'u8[4096]{0}', space=vmem, size = 0x1000, scoped, tag = 'input window, operand 0, single buffered']
    #allocation3 [shape = 's32[1]{0}', space=sflag, size = 0x4, scoped, tag = 'scoped memory for tpu_custom_call.1']
    #allocation4 [shape = 's32[1]{0}', space=sflag, size = 0x4, scoped, tag = 'scoped memory for tpu_custom_call.1']
    #allocation5 [shape = 'u8[8192]{0}', space=vmem, size = 0x2000, scoped, tag = 'input window, operand 1, single buffered']
    #allocation6 [shape = 's32[1]{0}', space=sflag, size = 0x4, scoped, tag = 'scoped memory for tpu_custom_call.1']
    #allocation7 [shape = 'u8[327680]{0}', space=vmem, size = 0x50000, scoped, tag = 'input window, operand 2, single buffered']
    #allocation8 [shape = 'u8[8192]{0}', space=vmem, size = 0x2000, scoped, tag = 'output window, operand 0, single buffered']
    %9 = vsyncpa [#allocation3], 0
    %10 = vsyncpa [#allocation6], 0
    %11 = vsyncpa [#allocation4], 0
    // Predicated region
    $region2: #{tpu_custom_call.1} parent=1 // pred_check
      _
    $region3: #{tpu_custom_call.1} parent=1 // pred_check_branch
      %13 = sbr.rel (0) target = $region5
    $region4: #{tpu_custom_call.1} parent=1 // pred_region
      %s15 = ssub.s32 128, 128
      %16 = vsyncadd [#allocation3], %s15
      %s17 = sshll.u32 [#allocation2], 4
      %s18 = int_to_ptr.vmem [resolvable:$true] %s17
      %23 = dma.hbm_to_vmem [thread:$0]  %s0, 128, %s18, [#allocation3], 64, 64, 4
    $region5: #{tpu_custom_call.1} parent=1 // pred_fallthru
      _
    // Predicated region
    $region6: #{tpu_custom_call.1} parent=1 // pred_check
      _
    $region7: #{tpu_custom_call.1} parent=1 // pred_check_branch
      %25 = sbr.rel (0) target = $region9
    $region8: #{tpu_custom_call.1} parent=1 // pred_region
      %s27 = ssub.s32 256, 256
      %28 = vsyncadd [#allocation6], %s27
      %s29 = sshll.u32 [#allocation5], 4
      %s30 = int_to_ptr.vmem [resolvable:$true] %s29
      %35 = dma.hbm_to_vmem [thread:$0]  %s1, 256, %s30, [#allocation6], 128, 128, 8
    $region9: #{tpu_custom_call.1} parent=1 // pred_fallthru
      _
    // Predicated region
    $region10: #{tpu_custom_call.1} parent=1 // pred_check
      _
    $region11: #{tpu_custom_call.1} parent=1 // pred_check_branch
      %37 = sbr.rel (0) target = $region13
    $region12: #{tpu_custom_call.1} parent=1 // pred_region
      %s39 = ssub.s32 10240, 10240
      %40 = vsyncadd [#allocation6], %s39
      %s41 = sshll.u32 [#allocation7], 4
      %s42 = int_to_ptr.vmem [resolvable:$true] %s41
      %47 = dma.hbm_to_vmem [thread:$0]  %s2, 10240, %s42, [#allocation6], 128, 128, 8
    $region13: #{tpu_custom_call.1} parent=1 // pred_fallthru
      _
    // Predicated region
    $region14: #{tpu_custom_call.1} parent=1 // pred_check
      _
    $region15: #{tpu_custom_call.1} parent=1 // pred_check_branch
      %49 = sbr.rel (0) target = $region17
    $region16: #{tpu_custom_call.1} parent=1 // pred_region
      _
    $region17: #{tpu_custom_call.1} parent=1 // pred_fallthru
      _
    // Predicated region
    $region18: #{tpu_custom_call.1} parent=1 // pred_check
      _
    $region19: #{tpu_custom_call.1} parent=1 // pred_check_branch
      %51 = sbr.rel (0) target = $region21
    $region20: #{tpu_custom_call.1} parent=1 // pred_region
      %52 = dma.done [#allocation3], 128
    $region21: #{tpu_custom_call.1} parent=1 // pred_fallthru
      _
    // Predicated region
    $region22: #{tpu_custom_call.1} parent=1 // pred_check
      _
    $region23: #{tpu_custom_call.1} parent=1 // pred_check_branch
      %54 = sbr.rel (0) target = $region25
    $region24: #{tpu_custom_call.1} parent=1 // pred_region
      %55 = dma.done [#allocation6], 256
    $region25: #{tpu_custom_call.1} parent=1 // pred_fallthru
      _
    // Predicated region
    $region26: #{tpu_custom_call.1} parent=1 // pred_check
      _
    $region27: #{tpu_custom_call.1} parent=1 // pred_check_branch
      %57 = sbr.rel (0) target = $region29
    $region28: #{tpu_custom_call.1} parent=1 // pred_region
      %58 = dma.done [#allocation6], 10240
    $region29: #{tpu_custom_call.1} parent=1 // pred_fallthru
      _
    %v60 = vld [vmem:[#allocation2] sm:$0xf]
    %v61 = vld [vmem:[#allocation2 + $0x4] sm:$0xf]
    %v62 = vld [vmem:[#allocation5] sm:$0xff]
    %v63 = vld [vmem:[#allocation5 + $0x8] sm:$0xff]
    %v64 = vld [vmem:[#allocation7] sm:$0xff]
    %v65 = vld [vmem:[#allocation7 + $0x8] sm:$0xff]
    %v66 = vld [vmem:[#allocation7 + $0x10] sm:$0xff]
    %v67 = vld [vmem:[#allocation7 + $0x18] sm:$0xff]
    %v68 = vld [vmem:[#allocation7 + $0x20] sm:$0xff]
    %v69 = vld [vmem:[#allocation7 + $0x28] sm:$0xff]
    %v70 = vld [vmem:[#allocation7 + $0x30] sm:$0xff]
    %v71 = vld [vmem:[#allocation7 + $0x38] sm:$0xff]
    %v72 = vld [vmem:[#allocation7 + $0x40] sm:$0xff]
    %v73 = vld [vmem:[#allocation7 + $0x48] sm:$0xff]
    %v74 = vld [vmem:[#allocation7 + $0x50] sm:$0xff]
    %v75 = vld [vmem:[#allocation7 + $0x58] sm:$0xff]
    %v76 = vld [vmem:[#allocation7 + $0x60] sm:$0xff]
    %v77 = vld [vmem:[#allocation7 + $0x68] sm:$0xff]
    %v78 = vld [vmem:[#allocation7 + $0x70] sm:$0xff]
    %v79 = vld [vmem:[#allocation7 + $0x78] sm:$0xff]
    %80 = vmatprep.subr.mxu0 0.0
    %81 = vmatpush1.msra.mxu0 %v64
    %82 = vmatprep.subr.mxu0 0.0
    %83 = vmatpush1.msra.mxu0 %v65
    %84 = vmatprep.subr.mxu0 0.0
    %85 = vmatpush1.msra.mxu0 %v66
    %86 = vmatprep.subr.mxu0 0.0
    %87 = vmatpush1.msra.mxu0 %v67
    %88 = vmatprep.subr.mxu0 0.0
    %89 = vmatpush1.msra.mxu0 %v68
    %90 = vmatprep.subr.mxu0 0.0
    %91 = vmatpush1.msra.mxu0 %v69
    %92 = vmatprep.subr.mxu0 0.0
    %93 = vmatpush1.msra.mxu0 %v70
    %94 = vmatprep.subr.mxu0 0.0
    %95 = vmatpush1.msra.mxu0 %v71
    %96 = vmatprep.subr.mxu0 0.0
    %97 = vmatpush1.msra.mxu0 %v72
    %98 = vmatprep.subr.mxu0 0.0
    %99 = vmatpush1.msra.mxu0 %v73
    %100 = vmatprep.subr.mxu0 0.0
    %101 = vmatpush1.msra.mxu0 %v74
    %102 = vmatprep.subr.mxu0 0.0
    %103 = vmatpush1.msra.mxu0 %v75
    %104 = vmatprep.subr.mxu0 0.0
    %105 = vmatpush1.msra.mxu0 %v76
    %106 = vmatprep.subr.mxu0 0.0
    %107 = vmatpush1.msra.mxu0 %v77
    %108 = vmatprep.subr.mxu0 0.0
    %109 = vmatpush1.msra.mxu0 %v78
    %110 = vmatprep.subr.mxu0 0.0
    %111 = vmatpush1.msra.mxu0 %v79
    %112 = vmatprep.subr.mxu0 0.0
    %113 = vmatpush1.msra.mxu0 0.0
    %114 = vmatprep.subr.mxu0 0.0
    %115 = vmatpush1.msra.mxu0 0.0
    %116 = vmatprep.subr.mxu0 0.0
    %117 = vmatpush1.msra.mxu0 0.0
    %118 = vmatprep.subr.mxu0 0.0
    %119 = vmatpush1.msra.mxu0 0.0
    %120 = vmatprep.subr.mxu0 0.0
    %121 = vmatpush1.msra.mxu0 0.0
    %122 = vmatprep.subr.mxu0 0.0
    %123 = vmatpush1.msra.mxu0 0.0
    %124 = vmatprep.subr.mxu0 0.0
    %125 = vmatpush1.msra.mxu0 0.0
    %126 = vmatprep.subr.mxu0 0.0
    %127 = vmatpush1.msra.mxu0 0.0
    %128 = vmatprep.subr.mxu0 0.0
    %129 = vmatpush1.msra.mxu0 0.0
    %130 = vmatprep.subr.mxu0 0.0
    %131 = vmatpush1.msra.mxu0 0.0
    %132 = vmatprep.subr.mxu0 0.0
    %133 = vmatpush1.msra.mxu0 0.0
    %134 = vmatprep.subr.mxu0 0.0
    %135 = vmatpush1.msra.mxu0 0.0
    %136 = vmatprep.subr.mxu0 0.0
    %137 = vmatpush1.msra.mxu0 0.0
    %138 = vmatprep.subr.mxu0 0.0
    %139 = vmatpush1.msra.mxu0 0.0
    %140 = vmatprep.subr.mxu0 0.0
    %141 = vmatpush1.msra.mxu0 0.0
    %142 = vmatprep.subr.mxu0 0.0
    %143 = vmatpush1.msra.mxu0 0.0
    %144 = vmatprep.mubr.f32.mxu0 0.0
    %145 = vmatmul.mubr.f32.gmra.mrb[0].mxu0 %v62
    %v146 = vpop.f32.mrb[0].mxu0
    %v147 = vadd.f32 0.0, %v146
    %v148 = vpop.f32.mrb[0].mxu0
    %149 = vmatprep.mubr.f32.mxu0 0.0
    %150 = vmatmul.mubr.f32.gmra.mrb[0].mxu0 %v63
    %v151 = vpop.f32.mrb[0].mxu0
    %v152 = vadd.f32 0.0, %v151
    %v153 = vpop.f32.mrb[0].mxu0
    %154 = vdwg.mxu0
    %v155 = vpack.c.bf16 %v152, %v147
    %v156 = vld [vmem:[%s3] sm:$0x1]
    %v158 = vlaneseq
    %v159 = vshrl.u32 %v158, 7
    %v160 = vsub.s32 0, %v159
    %v161 = vrot.slane %v156, %v160
    %v165 = vunpack.c.l.b16 %v60
    %v166 = vunpack.c.l.b16 %v61
    %v167 = vpack.c.b16 %v166, %v165
    %vm168 = vcmask 130048
    %v170 = vsel %vm168, %v167, 0
    %172 = vmatprep.subr.bf16.mxu0 0
    %173 = vmatpush1.bf16.msra.mxu0 %v155
    %174 = vmatprep.subr.bf16.mxu0 0
    %175 = vmatpush1.bf16.msra.mxu0 0
    %176 = vmatprep.subr.bf16.mxu0 0
    %177 = vmatpush1.bf16.msra.mxu0 0
    %178 = vmatprep.subr.bf16.mxu0 0
    %179 = vmatpush1.bf16.msra.mxu0 0
    %180 = vmatprep.subr.bf16.mxu0 0
    %181 = vmatpush1.bf16.msra.mxu0 0
    %182 = vmatprep.subr.bf16.mxu0 0
    %183 = vmatpush1.bf16.msra.mxu0 0
    %184 = vmatprep.subr.bf16.mxu0 0
    %185 = vmatpush1.bf16.msra.mxu0 0
    %186 = vmatprep.subr.bf16.mxu0 0
    %187 = vmatpush1.bf16.msra.mxu0 0
    %188 = vmatprep.subr.bf16.mxu0 0
    %189 = vmatpush1.bf16.msra.mxu0 0
    %190 = vmatprep.subr.bf16.mxu0 0
    %191 = vmatpush1.bf16.msra.mxu0 0
    %192 = vmatprep.subr.bf16.mxu0 0
    %193 = vmatpush1.bf16.msra.mxu0 0
    %194 = vmatprep.subr.bf16.mxu0 0
    %195 = vmatpush1.bf16.msra.mxu0 0
    %196 = vmatprep.subr.bf16.mxu0 0
    %197 = vmatpush1.bf16.msra.mxu0 0
    %198 = vmatprep.subr.bf16.mxu0 0
    %199 = vmatpush1.bf16.msra.mxu0 0
    %200 = vmatprep.subr.bf16.mxu0 0
    %201 = vmatpush1.bf16.msra.mxu0 0
    %202 = vmatprep.subr.bf16.mxu0 0
    %203 = vmatpush1.bf16.msra.mxu0 0
    %204 = vmatprep.mubr.bf16.mxu0 0
    %205 = vmatmul.mubr.bf16.gmra.mrb[0].mxu0 %v170
    %v206 = vpop.f32.mrb[0].mxu0
    %v207 = vadd.f32 %v161, %v206
    %v208 = vpop.f32.mrb[0].mxu0
    %v209 = vpop.f32.mrb[0].mxu0
    %v210 = vadd.f32 %v161, %v209
    %v211 = vpop.f32.mrb[0].mxu0
    %212 = vdwg.mxu0
    %v213 = vmax.f32 %v207, 0.0
    %v214 = vmax.f32 %v210, 0.0
    %s215 = scalar_lea.vmem [#allocation7], 128
    %v216 = vld [vmem:[%s215] sm:$0xff]
    %v217 = vld [vmem:[%s215 + $0x8] sm:$0xff]
    %v218 = vld [vmem:[%s215 + $0x10] sm:$0xff]
    %v219 = vld [vmem:[%s215 + $0x18] sm:$0xff]
    %v220 = vld [vmem:[%s215 + $0x20] sm:$0xff]
    %v221 = vld [vmem:[%s215 + $0x28] sm:$0xff]
    %v222 = vld [vmem:[%s215 + $0x30] sm:$0xff]
    %v223 = vld [vmem:[%s215 + $0x38] sm:$0xff]
    %v224 = vld [vmem:[%s215 + $0x40] sm:$0xff]
    %v225 = vld [vmem:[%s215 + $0x48] sm:$0xff]
    %v226 = vld [vmem:[%s215 + $0x50] sm:$0xff]
    %v227 = vld [vmem:[%s215 + $0x58] sm:$0xff]
    %v228 = vld [vmem:[%s215 + $0x60] sm:$0xff]
    %v229 = vld [vmem:[%s215 + $0x68] sm:$0xff]
    %v230 = vld [vmem:[%s215 + $0x70] sm:$0xff]
    %v231 = vld [vmem:[%s215 + $0x78] sm:$0xff]
    %232 = vmatprep.subr.mxu0 0.0
    %233 = vmatpush1.msra.mxu0 %v216
    %234 = vmatprep.subr.mxu0 0.0
    %235 = vmatpush1.msra.mxu0 %v217
    %236 = vmatprep.subr.mxu0 0.0
    %237 = vmatpush1.msra.mxu0 %v218
    %238 = vmatprep.subr.mxu0 0.0
    %239 = vmatpush1.msra.mxu0 %v219
    %240 = vmatprep.subr.mxu0 0.0
    %241 = vmatpush1.msra.mxu0 %v220
    %242 = vmatprep.subr.mxu0 0.0
    %243 = vmatpush1.msra.mxu0 %v221
    %244 = vmatprep.subr.mxu0 0.0
    %245 = vmatpush1.msra.mxu0 %v222
    %246 = vmatprep.subr.mxu0 0.0
    %247 = vmatpush1.msra.mxu0 %v223
    %248 = vmatprep.subr.mxu0 0.0
    %249 = vmatpush1.msra.mxu0 %v224
    %250 = vmatprep.subr.mxu0 0.0
    %251 = vmatpush1.msra.mxu0 %v225
    %252 = vmatprep.subr.mxu0 0.0
    %253 = vmatpush1.msra.mxu0 %v226
    %254 = vmatprep.subr.mxu0 0.0
    %255 = vmatpush1.msra.mxu0 %v227
    %256 = vmatprep.subr.mxu0 0.0
    %257 = vmatpush1.msra.mxu0 %v228
    %258 = vmatprep.subr.mxu0 0.0
    %259 = vmatpush1.msra.mxu0 %v229
    %260 = vmatprep.subr.mxu0 0.0
    %261 = vmatpush1.msra.mxu0 %v230
    %262 = vmatprep.subr.mxu0 0.0
    %263 = vmatpush1.msra.mxu0 %v231
    %264 = vmatprep.subr.mxu0 0.0
    %265 = vmatpush1.msra.mxu0 0.0
    %266 = vmatprep.subr.mxu0 0.0
    %267 = vmatpush1.msra.mxu0 0.0
    %268 = vmatprep.subr.mxu0 0.0
    %269 = vmatpush1.msra.mxu0 0.0
    %270 = vmatprep.subr.mxu0 0.0
    %271 = vmatpush1.msra.mxu0 0.0
    %272 = vmatprep.subr.mxu0 0.0
    %273 = vmatpush1.msra.mxu0 0.0
    %274 = vmatprep.subr.mxu0 0.0
    %275 = vmatpush1.msra.mxu0 0.0
    %276 = vmatprep.subr.mxu0 0.0
    %277 = vmatpush1.msra.mxu0 0.0
    %278 = vmatprep.subr.mxu0 0.0
    %279 = vmatpush1.msra.mxu0 0.0
    %280 = vmatprep.subr.mxu0 0.0
    %281 = vmatpush1.msra.mxu0 0.0
    %282 = vmatprep.subr.mxu0 0.0
    %283 = vmatpush1.msra.mxu0 0.0
    %284 = vmatprep.subr.mxu0 0.0
    %285 = vmatpush1.msra.mxu0 0.0
    %286 = vmatprep.subr.mxu0 0.0
    %287 = vmatpush1.msra.mxu0 0.0
    %288 = vmatprep.subr.mxu0 0.0
    %289 = vmatpush1.msra.mxu0 0.0
    %290 = vmatprep.subr.mxu0 0.0
    %291 = vmatpush1.msra.mxu0 0.0
    %292 = vmatprep.subr.mxu0 0.0
    %293 = vmatpush1.msra.mxu0 0.0
    %294 = vmatprep.subr.mxu0 0.0
    %295 = vmatpush1.msra.mxu0 0.0
    %296 = vmatprep.mubr.f32.mxu0 0.0
    %297 = vmatmul.mubr.f32.gmra.mrb[0].mxu0 %v213
    %v298 = vpop.f32.mrb[0].mxu0
    %v299 = vadd.f32 0.0, %v298
    %v300 = vpop.f32.mrb[0].mxu0
    %301 = vmatprep.mubr.f32.mxu0 0.0
    %302 = vmatmul.mubr.f32.gmra.mrb[0].mxu0 %v214
    %v303 = vpop.f32.mrb[0].mxu0
    %v304 = vadd.f32 0.0, %v303
    %v305 = vpop.f32.mrb[0].mxu0
    %306 = vdwg.mxu0
    %v307 = vpack.c.bf16 %v304, %v299
    %s308 = scalar_lea.vmem %s3, 1
    %v309 = vld [vmem:[%s308] sm:$0x1]
    %v311 = vlaneseq
    %v312 = vshrl.u32 %v311, 7
    %v313 = vsub.s32 0, %v312
    %v314 = vrot.slane %v309, %v313
    %316 = vmatprep.subr.bf16.mxu0 0
    %317 = vmatpush1.bf16.msra.mxu0 %v307
    %318 = vmatprep.subr.bf16.mxu0 0
    %319 = vmatpush1.bf16.msra.mxu0 0
    %320 = vmatprep.subr.bf16.mxu0 0
    %321 = vmatpush1.bf16.msra.mxu0 0
    %322 = vmatprep.subr.bf16.mxu0 0
    %323 = vmatpush1.bf16.msra.mxu0 0
    %324 = vmatprep.subr.bf16.mxu0 0
    %325 = vmatpush1.bf16.msra.mxu0 0
    %326 = vmatprep.subr.bf16.mxu0 0
    %327 = vmatpush1.bf16.msra.mxu0 0
    %328 = vmatprep.subr.bf16.mxu0 0
    %329 = vmatpush1.bf16.msra.mxu0 0
    %330 = vmatprep.subr.bf16.mxu0 0
    %331 = vmatpush1.bf16.msra.mxu0 0
    %332 = vmatprep.subr.bf16.mxu0 0
    %333 = vmatpush1.bf16.msra.mxu0 0
    %334 = vmatprep.subr.bf16.mxu0 0
    %335 = vmatpush1.bf16.msra.mxu0 0
    %336 = vmatprep.subr.bf16.mxu0 0
    %337 = vmatpush1.bf16.msra.mxu0 0
    %338 = vmatprep.subr.bf16.mxu0 0
    %339 = vmatpush1.bf16.msra.mxu0 0
    %340 = vmatprep.subr.bf16.mxu0 0
    %341 = vmatpush1.bf16.msra.mxu0 0
    %342 = vmatprep.subr.bf16.mxu0 0
    %343 = vmatpush1.bf16.msra.mxu0 0
    %344 = vmatprep.subr.bf16.mxu0 0
    %345 = vmatpush1.bf16.msra.mxu0 0
    %346 = vmatprep.subr.bf16.mxu0 0
    %347 = vmatpush1.bf16.msra.mxu0 0
    %348 = vmatprep.mubr.bf16.mxu0 0
    %349 = vmatmul.mubr.bf16.gmra.mrb[0].mxu0 %v170
    %v350 = vpop.f32.mrb[0].mxu0
    %v351 = vadd.f32 %v314, %v350
    %v352 = vpop.f32.mrb[0].mxu0
    %v353 = vpop.f32.mrb[0].mxu0
    %v354 = vadd.f32 %v314, %v353
    %v355 = vpop.f32.mrb[0].mxu0
    %356 = vdwg.mxu0
    %v357 = vmax.f32 %v351, 0.0
    %v358 = vmax.f32 %v354, 0.0
    %s359 = scalar_lea.vmem [#allocation7], 256
    %v360 = vld [vmem:[%s359] sm:$0xff]
    %v361 = vld [vmem:[%s359 + $0x8] sm:$0xff]
    %v362 = vld [vmem:[%s359 + $0x10] sm:$0xff]
    %v363 = vld [vmem:[%s359 + $0x18] sm:$0xff]
    %v364 = vld [vmem:[%s359 + $0x20] sm:$0xff]
    %v365 = vld [vmem:[%s359 + $0x28] sm:$0xff]
    %v366 = vld [vmem:[%s359 + $0x30] sm:$0xff]
    %v367 = vld [vmem:[%s359 + $0x38] sm:$0xff]
    %v368 = vld [vmem:[%s359 + $0x40] sm:$0xff]
    %v369 = vld [vmem:[%s359 + $0x48] sm:$0xff]
    %v370 = vld [vmem:[%s359 + $0x50] sm:$0xff]
    %v371 = vld [vmem:[%s359 + $0x58] sm:$0xff]
    %v372 = vld [vmem:[%s359 + $0x60] sm:$0xff]
    %v373 = vld [vmem:[%s359 + $0x68] sm:$0xff]
    %v374 = vld [vmem:[%s359 + $0x70] sm:$0xff]
    %v375 = vld [vmem:[%s359 + $0x78] sm:$0xff]
    %376 = vmatprep.subr.mxu0 0.0
    %377 = vmatpush1.msra.mxu0 %v360
    %378 = vmatprep.subr.mxu0 0.0
    %379 = vmatpush1.msra.mxu0 %v361
    %380 = vmatprep.subr.mxu0 0.0
    %381 = vmatpush1.msra.mxu0 %v362
    %382 = vmatprep.subr.mxu0 0.0
    %383 = vmatpush1.msra.mxu0 %v363
    %384 = vmatprep.subr.mxu0 0.0
    %385 = vmatpush1.msra.mxu0 %v364
    %386 = vmatprep.subr.mxu0 0.0
    %387 = vmatpush1.msra.mxu0 %v365
    %388 = vmatprep.subr.mxu0 0.0
    %389 = vmatpush1.msra.mxu0 %v366
    %390 = vmatprep.subr.mxu0 0.0
    %391 = vmatpush1.msra.mxu0 %v367
    %392 = vmatprep.subr.mxu0 0.0
    %393 = vmatpush1.msra.mxu0 %v368
    %394 = vmatprep.subr.mxu0 0.0
    %395 = vmatpush1.msra.mxu0 %v369
    %396 = vmatprep.subr.mxu0 0.0
    %397 = vmatpush1.msra.mxu0 %v370
    %398 = vmatprep.subr.mxu0 0.0
    %399 = vmatpush1.msra.mxu0 %v371
    %400 = vmatprep.subr.mxu0 0.0
    %401 = vmatpush1.msra.mxu0 %v372
    %402 = vmatprep.subr.mxu0 0.0
    %403 = vmatpush1.msra.mxu0 %v373
    %404 = vmatprep.subr.mxu0 0.0
    %405 = vmatpush1.msra.mxu0 %v374
    %406 = vmatprep.subr.mxu0 0.0
    %407 = vmatpush1.msra.mxu0 %v375
    %408 = vmatprep.subr.mxu0 0.0
    %409 = vmatpush1.msra.mxu0 0.0
    %410 = vmatprep.subr.mxu0 0.0
    %411 = vmatpush1.msra.mxu0 0.0
    %412 = vmatprep.subr.mxu0 0.0
    %413 = vmatpush1.msra.mxu0 0.0
    %414 = vmatprep.subr.mxu0 0.0
    %415 = vmatpush1.msra.mxu0 0.0
    %416 = vmatprep.subr.mxu0 0.0
    %417 = vmatpush1.msra.mxu0 0.0
    %418 = vmatprep.subr.mxu0 0.0
    %419 = vmatpush1.msra.mxu0 0.0
    %420 = vmatprep.subr.mxu0 0.0
    %421 = vmatpush1.msra.mxu0 0.0
    %422 = vmatprep.subr.mxu0 0.0
    %423 = vmatpush1.msra.mxu0 0.0
    %424 = vmatprep.subr.mxu0 0.0
    %425 = vmatpush1.msra.mxu0 0.0
    %426 = vmatprep.subr.mxu0 0.0
    %427 = vmatpush1.msra.mxu0 0.0
    %428 = vmatprep.subr.mxu0 0.0
    %429 = vmatpush1.msra.mxu0 0.0
    %430 = vmatprep.subr.mxu0 0.0
    %431 = vmatpush1.msra.mxu0 0.0
    %432 = vmatprep.subr.mxu0 0.0
    %433 = vmatpush1.msra.mxu0 0.0
    %434 = vmatprep.subr.mxu0 0.0
    %435 = vmatpush1.msra.mxu0 0.0
    %436 = vmatprep.subr.mxu0 0.0
    %437 = vmatpush1.msra.mxu0 0.0
    %438 = vmatprep.subr.mxu0 0.0
    %439 = vmatpush1.msra.mxu0 0.0
    %440 = vmatprep.mubr.f32.mxu0 0.0
    %441 = vmatmul.mubr.f32.gmra.mrb[0].mxu0 %v357
    %v442 = vpop.f32.mrb[0].mxu0
    %v443 = vadd.f32 0.0, %v442
    %v444 = vpop.f32.mrb[0].mxu0
    %445 = vmatprep.mubr.f32.mxu0 0.0
    %446 = vmatmul.mubr.f32.gmra.mrb[0].mxu0 %v358
    %v447 = vpop.f32.mrb[0].mxu0
    %v448 = vadd.f32 0.0, %v447
    %v449 = vpop.f32.mrb[0].mxu0
    %450 = vdwg.mxu0
    %v451 = vpack.c.bf16 %v448, %v443
    %s452 = scalar_lea.vmem %s3, 2
    %v453 = vld [vmem:[%s452] sm:$0x1]
    %v455 = vlaneseq
    %v456 = vshrl.u32 %v455, 7
    %v457 = vsub.s32 0, %v456
    %v458 = vrot.slane %v453, %v457
    %460 = vmatprep.subr.bf16.mxu0 0
    %461 = vmatpush1.bf16.msra.mxu0 %v451
    %462 = vmatprep.subr.bf16.mxu0 0
    %463 = vmatpush1.bf16.msra.mxu0 0
    %464 = vmatprep.subr.bf16.mxu0 0
    %465 = vmatpush1.bf16.msra.mxu0 0
    %466 = vmatprep.subr.bf16.mxu0 0
    %467 = vmatpush1.bf16.msra.mxu0 0
    %468 = vmatprep.subr.bf16.mxu0 0
    %469 = vmatpush1.bf16.msra.mxu0 0
    %470 = vmatprep.subr.bf16.mxu0 0
    %471 = vmatpush1.bf16.msra.mxu0 0
    %472 = vmatprep.subr.bf16.mxu0 0
    %473 = vmatpush1.bf16.msra.mxu0 0
    %474 = vmatprep.subr.bf16.mxu0 0
    %475 = vmatpush1.bf16.msra.mxu0 0
    %476 = vmatprep.subr.bf16.mxu0 0
    %477 = vmatpush1.bf16.msra.mxu0 0
    %478 = vmatprep.subr.bf16.mxu0 0
    %479 = vmatpush1.bf16.msra.mxu0 0
    %480 = vmatprep.subr.bf16.mxu0 0
    %481 = vmatpush1.bf16.msra.mxu0 0
    %482 = vmatprep.subr.bf16.mxu0 0
    %483 = vmatpush1.bf16.msra.mxu0 0
    %484 = vmatprep.subr.bf16.mxu0 0
    %485 = vmatpush1.bf16.msra.mxu0 0
    %486 = vmatprep.subr.bf16.mxu0 0
    %487 = vmatpush1.bf16.msra.mxu0 0
    %488 = vmatprep.subr.bf16.mxu0 0
    %489 = vmatpush1.bf16.msra.mxu0 0
    %490 = vmatprep.subr.bf16.mxu0 0
    %491 = vmatpush1.bf16.msra.mxu0 0
    %492 = vmatprep.mubr.bf16.mxu0 0
    %493 = vmatmul.mubr.bf16.gmra.mrb[0].mxu0 %v170
    %v494 = vpop.f32.mrb[0].mxu0
    %v495 = vadd.f32 %v458, %v494
    %v496 = vpop.f32.mrb[0].mxu0
    %v497 = vpop.f32.mrb[0].mxu0
    %v498 = vadd.f32 %v458, %v497
    %v499 = vpop.f32.mrb[0].mxu0
    %500 = vdwg.mxu0
    %v501 = vmax.f32 %v495, 0.0
    %v502 = vmax.f32 %v498, 0.0
    %s503 = scalar_lea.vmem [#allocation7], 384
    %v504 = vld [vmem:[%s503] sm:$0xff]
    %v505 = vld [vmem:[%s503 + $0x8] sm:$0xff]
    %v506 = vld [vmem:[%s503 + $0x10] sm:$0xff]
    %v507 = vld [vmem:[%s503 + $0x18] sm:$0xff]
    %v508 = vld [vmem:[%s503 + $0x20] sm:$0xff]
    %v509 = vld [vmem:[%s503 + $0x28] sm:$0xff]
    %v510 = vld [vmem:[%s503 + $0x30] sm:$0xff]
    %v511 = vld [vmem:[%s503 + $0x38] sm:$0xff]
    %v512 = vld [vmem:[%s503 + $0x40] sm:$0xff]
    %v513 = vld [vmem:[%s503 + $0x48] sm:$0xff]
    %v514 = vld [vmem:[%s503 + $0x50] sm:$0xff]
    %v515 = vld [vmem:[%s503 + $0x58] sm:$0xff]
    %v516 = vld [vmem:[%s503 + $0x60] sm:$0xff]
    %v517 = vld [vmem:[%s503 + $0x68] sm:$0xff]
    %v518 = vld [vmem:[%s503 + $0x70] sm:$0xff]
    %v519 = vld [vmem:[%s503 + $0x78] sm:$0xff]
    %520 = vmatprep.subr.mxu0 0.0
    %521 = vmatpush1.msra.mxu0 %v504
    %522 = vmatprep.subr.mxu0 0.0
    %523 = vmatpush1.msra.mxu0 %v505
    %524 = vmatprep.subr.mxu0 0.0
    %525 = vmatpush1.msra.mxu0 %v506
    %526 = vmatprep.subr.mxu0 0.0
    %527 = vmatpush1.msra.mxu0 %v507
    %528 = vmatprep.subr.mxu0 0.0
    %529 = vmatpush1.msra.mxu0 %v508
    %530 = vmatprep.subr.mxu0 0.0
    %531 = vmatpush1.msra.mxu0 %v509
    %532 = vmatprep.subr.mxu0 0.0
    %533 = vmatpush1.msra.mxu0 %v510
    %534 = vmatprep.subr.mxu0 0.0
    %535 = vmatpush1.msra.mxu0 %v511
    %536 = vmatprep.subr.mxu0 0.0
    %537 = vmatpush1.msra.mxu0 %v512
    %538 = vmatprep.subr.mxu0 0.0
    %539 = vmatpush1.msra.mxu0 %v513
    %540 = vmatprep.subr.mxu0 0.0
    %541 = vmatpush1.msra.mxu0 %v514
    %542 = vmatprep.subr.mxu0 0.0
    %543 = vmatpush1.msra.mxu0 %v515
    %544 = vmatprep.subr.mxu0 0.0
    %545 = vmatpush1.msra.mxu0 %v516
    %546 = vmatprep.subr.mxu0 0.0
    %547 = vmatpush1.msra.mxu0 %v517
    %548 = vmatprep.subr.mxu0 0.0
    %549 = vmatpush1.msra.mxu0 %v518
    %550 = vmatprep.subr.mxu0 0.0
    %551 = vmatpush1.msra.mxu0 %v519
    %552 = vmatprep.subr.mxu0 0.0
    %553 = vmatpush1.msra.mxu0 0.0
    %554 = vmatprep.subr.mxu0 0.0
    %555 = vmatpush1.msra.mxu0 0.0
    %556 = vmatprep.subr.mxu0 0.0
    %557 = vmatpush1.msra.mxu0 0.0
    %558 = vmatprep.subr.mxu0 0.0
    %559 = vmatpush1.msra.mxu0 0.0
    %560 = vmatprep.subr.mxu0 0.0
    %561 = vmatpush1.msra.mxu0 0.0
    %562 = vmatprep.subr.mxu0 0.0
    %563 = vmatpush1.msra.mxu0 0.0
    %564 = vmatprep.subr.mxu0 0.0
    %565 = vmatpush1.msra.mxu0 0.0
    %566 = vmatprep.subr.mxu0 0.0
    %567 = vmatpush1.msra.mxu0 0.0
    %568 = vmatprep.subr.mxu0 0.0
    %569 = vmatpush1.msra.mxu0 0.0
    %570 = vmatprep.subr.mxu0 0.0
    %571 = vmatpush1.msra.mxu0 0.0
    %572 = vmatprep.subr.mxu0 0.0
    %573 = vmatpush1.msra.mxu0 0.0
    %574 = vmatprep.subr.mxu0 0.0
    %575 = vmatpush1.msra.mxu0 0.0
    %576 = vmatprep.subr.mxu0 0.0
    %577 = vmatpush1.msra.mxu0 0.0
    %578 = vmatprep.subr.mxu0 0.0
    %579 = vmatpush1.msra.mxu0 0.0
    %580 = vmatprep.subr.mxu0 0.0
    %581 = vmatpush1.msra.mxu0 0.0
    %582 = vmatprep.subr.mxu0 0.0
    %583 = vmatpush1.msra.mxu0 0.0
    %584 = vmatprep.mubr.f32.mxu0 0.0
    %585 = vmatmul.mubr.f32.gmra.mrb[0].mxu0 %v501
    %v586 = vpop.f32.mrb[0].mxu0
    %v587 = vadd.f32 0.0, %v586
    %v588 = vpop.f32.mrb[0].mxu0
    %589 = vmatprep.mubr.f32.mxu0 0.0
    %590 = vmatmul.mubr.f32.gmra.mrb[0].mxu0 %v502
    %v591 = vpop.f32.mrb[0].mxu0
    %v592 = vadd.f32 0.0, %v591
    %v593 = vpop.f32.mrb[0].mxu0
    %594 = vdwg.mxu0
    %v595 = vpack.c.bf16 %v592, %v587
    %s596 = scalar_lea.vmem %s3, 3
    %v597 = vld [vmem:[%s596] sm:$0x1]
    %v599 = vlaneseq
    %v600 = vshrl.u32 %v599, 7
    %v601 = vsub.s32 0, %v600
    %v602 = vrot.slane %v597, %v601
    %604 = vmatprep.subr.bf16.mxu0 0
    %605 = vmatpush1.bf16.msra.mxu0 %v595
    %606 = vmatprep.subr.bf16.mxu0 0
    %607 = vmatpush1.bf16.msra.mxu0 0
    %608 = vmatprep.subr.bf16.mxu0 0
    %609 = vmatpush1.bf16.msra.mxu0 0
    %610 = vmatprep.subr.bf16.mxu0 0
    %611 = vmatpush1.bf16.msra.mxu0 0
    %612 = vmatprep.subr.bf16.mxu0 0
    %613 = vmatpush1.bf16.msra.mxu0 0
    %614 = vmatprep.subr.bf16.mxu0 0
    %615 = vmatpush1.bf16.msra.mxu0 0
    %616 = vmatprep.subr.bf16.mxu0 0
    %617 = vmatpush1.bf16.msra.mxu0 0
    %618 = vmatprep.subr.bf16.mxu0 0
    %619 = vmatpush1.bf16.msra.mxu0 0
    %620 = vmatprep.subr.bf16.mxu0 0
    %621 = vmatpush1.bf16.msra.mxu0 0
    %622 = vmatprep.subr.bf16.mxu0 0
    %623 = vmatpush1.bf16.msra.mxu0 0
    %624 = vmatprep.subr.bf16.mxu0 0
    %625 = vmatpush1.bf16.msra.mxu0 0
    %626 = vmatprep.subr.bf16.mxu0 0
    %627 = vmatpush1.bf16.msra.mxu0 0
    %628 = vmatprep.subr.bf16.mxu0 0
    %629 = vmatpush1.bf16.msra.mxu0 0
    %630 = vmatprep.subr.bf16.mxu0 0
    %631 = vmatpush1.bf16.msra.mxu0 0
    %632 = vmatprep.subr.bf16.mxu0 0
    %633 = vmatpush1.bf16.msra.mxu0 0
    %634 = vmatprep.subr.bf16.mxu0 0
    %635 = vmatpush1.bf16.msra.mxu0 0
    %636 = vmatprep.mubr.bf16.mxu0 0
    %637 = vmatmul.mubr.bf16.gmra.mrb[0].mxu0 %v170
    %v638 = vpop.f32.mrb[0].mxu0
    %v639 = vadd.f32 %v602, %v638
    %v640 = vpop.f32.mrb[0].mxu0
    %v641 = vpop.f32.mrb[0].mxu0
    %v642 = vadd.f32 %v602, %v641
    %v643 = vpop.f32.mrb[0].mxu0
    %644 = vdwg.mxu0
    %v645 = vmax.f32 %v639, 0.0
    %v646 = vmax.f32 %v642, 0.0
    %s647 = scalar_lea.vmem [#allocation7], 512
    %v648 = vld [vmem:[%s647] sm:$0xff]
    %v649 = vld [vmem:[%s647 + $0x8] sm:$0xff]
    %v650 = vld [vmem:[%s647 + $0x10] sm:$0xff]
    %v651 = vld [vmem:[%s647 + $0x18] sm:$0xff]
    %v652 = vld [vmem:[%s647 + $0x20] sm:$0xff]
    %v653 = vld [vmem:[%s647 + $0x28] sm:$0xff]
    %v654 = vld [vmem:[%s647 + $0x30] sm:$0xff]
    %v655 = vld [vmem:[%s647 + $0x38] sm:$0xff]
    %v656 = vld [vmem:[%s647 + $0x40] sm:$0xff]
    %v657 = vld [vmem:[%s647 + $0x48] sm:$0xff]
    %v658 = vld [vmem:[%s647 + $0x50] sm:$0xff]
    %v659 = vld [vmem:[%s647 + $0x58] sm:$0xff]
    %v660 = vld [vmem:[%s647 + $0x60] sm:$0xff]
    %v661 = vld [vmem:[%s647 + $0x68] sm:$0xff]
    %v662 = vld [vmem:[%s647 + $0x70] sm:$0xff]
    %v663 = vld [vmem:[%s647 + $0x78] sm:$0xff]
    %664 = vmatprep.subr.mxu0 0.0
    %665 = vmatpush1.msra.mxu0 %v648
    %666 = vmatprep.subr.mxu0 0.0
    %667 = vmatpush1.msra.mxu0 %v649
    %668 = vmatprep.subr.mxu0 0.0
    %669 = vmatpush1.msra.mxu0 %v650
    %670 = vmatprep.subr.mxu0 0.0
    %671 = vmatpush1.msra.mxu0 %v651
    %672 = vmatprep.subr.mxu0 0.0
    %673 = vmatpush1.msra.mxu0 %v652
    %674 = vmatprep.subr.mxu0 0.0
    %675 = vmatpush1.msra.mxu0 %v653
    %676 = vmatprep.subr.mxu0 0.0
    %677 = vmatpush1.msra.mxu0 %v654
    %678 = vmatprep.subr.mxu0 0.0
    %679 = vmatpush1.msra.mxu0 %v655
    %680 = vmatprep.subr.mxu0 0.0
    %681 = vmatpush1.msra.mxu0 %v656
    %682 = vmatprep.subr.mxu0 0.0
    %683 = vmatpush1.msra.mxu0 %v657
    %684 = vmatprep.subr.mxu0 0.0
    %685 = vmatpush1.msra.mxu0 %v658
    %686 = vmatprep.subr.mxu0 0.0
    %687 = vmatpush1.msra.mxu0 %v659
    %688 = vmatprep.subr.mxu0 0.0
    %689 = vmatpush1.msra.mxu0 %v660
    %690 = vmatprep.subr.mxu0 0.0
    %691 = vmatpush1.msra.mxu0 %v661
    %692 = vmatprep.subr.mxu0 0.0
    %693 = vmatpush1.msra.mxu0 %v662
    %694 = vmatprep.subr.mxu0 0.0
    %695 = vmatpush1.msra.mxu0 %v663
    %696 = vmatprep.subr.mxu0 0.0
    %697 = vmatpush1.msra.mxu0 0.0
    %698 = vmatprep.subr.mxu0 0.0
    %699 = vmatpush1.msra.mxu0 0.0
    %700 = vmatprep.subr.mxu0 0.0
    %701 = vmatpush1.msra.mxu0 0.0
    %702 = vmatprep.subr.mxu0 0.0
    %703 = vmatpush1.msra.mxu0 0.0
    %704 = vmatprep.subr.mxu0 0.0
    %705 = vmatpush1.msra.mxu0 0.0
    %706 = vmatprep.subr.mxu0 0.0
    %707 = vmatpush1.msra.mxu0 0.0
    %708 = vmatprep.subr.mxu0 0.0
    %709 = vmatpush1.msra.mxu0 0.0
    %710 = vmatprep.subr.mxu0 0.0
    %711 = vmatpush1.msra.mxu0 0.0
    %712 = vmatprep.subr.mxu0 0.0
    %713 = vmatpush1.msra.mxu0 0.0
    %714 = vmatprep.subr.mxu0 0.0
    %715 = vmatpush1.msra.mxu0 0.0
    %716 = vmatprep.subr.mxu0 0.0
    %717 = vmatpush1.msra.mxu0 0.0
    %718 = vmatprep.subr.mxu0 0.0
    %719 = vmatpush1.msra.mxu0 0.0
    %720 = vmatprep.subr.mxu0 0.0
    %721 = vmatpush1.msra.mxu0 0.0
    %722 = vmatprep.subr.mxu0 0.0
    %723 = vmatpush1.msra.mxu0 0.0
    %724 = vmatprep.subr.mxu0 0.0
    %725 = vmatpush1.msra.mxu0 0.0
    %726 = vmatprep.subr.mxu0 0.0
    %727 = vmatpush1.msra.mxu0 0.0
    %728 = vmatprep.mubr.f32.mxu0 0.0
    %729 = vmatmul.mubr.f32.gmra.mrb[0].mxu0 %v645
    %v730 = vpop.f32.mrb[0].mxu0
    %v731 = vadd.f32 0.0, %v730
    %v732 = vpop.f32.mrb[0].mxu0
    %733 = vmatprep.mubr.f32.mxu0 0.0
    %734 = vmatmul.mubr.f32.gmra.mrb[0].mxu0 %v646
    %v735 = vpop.f32.mrb[0].mxu0
    %v736 = vadd.f32 0.0, %v735
    %v737 = vpop.f32.mrb[0].mxu0
    %738 = vdwg.mxu0
    %v739 = vpack.c.bf16 %v736, %v731
    %s740 = scalar_lea.vmem %s3, 4
    %v741 = vld [vmem:[%s740] sm:$0x1]
    %v743 = vlaneseq
    %v744 = vshrl.u32 %v743, 7
    %v745 = vsub.s32 0, %v744
    %v746 = vrot.slane %v741, %v745
    %748 = vmatprep.subr.bf16.mxu0 0
    %749 = vmatpush1.bf16.msra.mxu0 %v739
    %750 = vmatprep.subr.bf16.mxu0 0
    %751 = vmatpush1.bf16.msra.mxu0 0
    %752 = vmatprep.subr.bf16.mxu0 0
    %753 = vmatpush1.bf16.msra.mxu0 0
    %754 = vmatprep.subr.bf16.mxu0 0
    %755 = vmatpush1.bf16.msra.mxu0 0
    %756 = vmatprep.subr.bf16.mxu0 0
    %757 = vmatpush1.bf16.msra.mxu0 0
    %758 = vmatprep.subr.bf16.mxu0 0
    %759 = vmatpush1.bf16.msra.mxu0 0
    %760 = vmatprep.subr.bf16.mxu0 0
    %761 = vmatpush1.bf16.msra.mxu0 0
    %762 = vmatprep.subr.bf16.mxu0 0
    %763 = vmatpush1.bf16.msra.mxu0 0
    %764 = vmatprep.subr.bf16.mxu0 0
    %765 = vmatpush1.bf16.msra.mxu0 0
    %766 = vmatprep.subr.bf16.mxu0 0
    %767 = vmatpush1.bf16.msra.mxu0 0
    %768 = vmatprep.subr.bf16.mxu0 0
    %769 = vmatpush1.bf16.msra.mxu0 0
    %770 = vmatprep.subr.bf16.mxu0 0
    %771 = vmatpush1.bf16.msra.mxu0 0
    %772 = vmatprep.subr.bf16.mxu0 0
    %773 = vmatpush1.bf16.msra.mxu0 0
    %774 = vmatprep.subr.bf16.mxu0 0
    %775 = vmatpush1.bf16.msra.mxu0 0
    %776 = vmatprep.subr.bf16.mxu0 0
    %777 = vmatpush1.bf16.msra.mxu0 0
    %778 = vmatprep.subr.bf16.mxu0 0
    %779 = vmatpush1.bf16.msra.mxu0 0
    %780 = vmatprep.mubr.bf16.mxu0 0
    %781 = vmatmul.mubr.bf16.gmra.mrb[0].mxu0 %v170
    %v782 = vpop.f32.mrb[0].mxu0
    %v783 = vadd.f32 %v746, %v782
    %v784 = vpop.f32.mrb[0].mxu0
    %v785 = vpop.f32.mrb[0].mxu0
    %v786 = vadd.f32 %v746, %v785
    %v787 = vpop.f32.mrb[0].mxu0
    %788 = vdwg.mxu0
    %789 = vst [vmem:[#allocation8] sm:$0xff] %v783
    %790 = vst [vmem:[#allocation8 + $0x8] sm:$0xff] %v786
    // Predicated region
    $region30: #{tpu_custom_call.1} parent=1 // pred_check
      _
    $region31: #{tpu_custom_call.1} parent=1 // pred_check_branch
      %792 = sbr.rel (0) target = $region33
    $region32: #{tpu_custom_call.1} parent=1 // pred_region
      %s794 = ssub.s32 256, 256
      %795 = vsyncadd [#allocation4], %s794
      %s796 = sshll.u32 [#allocation8], 4
      %s797 = int_to_ptr.vmem [resolvable:$true] %s796
      %802 = dma.vmem_to_hbm [thread:$0]  %s797, 256, %s4, [#allocation4], 128, 128, 8
    $region33: #{tpu_custom_call.1} parent=1 // pred_fallthru
      _
    // Predicated region
    $region34: #{tpu_custom_call.1} parent=1 // pred_check
      _
    $region35: #{tpu_custom_call.1} parent=1 // pred_check_branch
      %804 = sbr.rel (0) target = $region37
    $region36: #{tpu_custom_call.1} parent=1 // pred_region
      %805 = dma.done [#allocation4], 256
    $region37: #{tpu_custom_call.1} parent=1 // pred_fallthru
      _
    %806 = vsyncpa [#allocation3], 1
    %807 = vsyncpa [#allocation6], 1
    %808 = vsyncpa [#allocation4], 1

</llo_original>
